<compile_context>
chip_gen: v7x
topology: tpu7x:2x2x1
jax: 0.10.0
libtpu: 0.0.40
codegen_flags: <defaults>
</compile_context>

<pallas_src>
import functools

import jax
import jax.numpy as jnp
from jax import lax
from jax.experimental import pallas as pl
from jax.experimental.pallas import tpu as pltpu


def _round_up(x, mult):
    return (x + mult - 1) // mult * mult


def _pick_row_tile(h_out, row_width, row_target=2048):
    """Largest divisor `th` of h_out with th*row_width <= row_target (bounds the
    per-step matmul rows / accumulator); the full image if it already fits."""
    if h_out * row_width <= row_target:
        return h_out
    divs = [d for d in range(1, h_out + 1)
            if h_out % d == 0 and d * row_width <= row_target]
    return max(divs) if divs else 1


def _vmem_limit(per_step_bytes):
    need = 2 * per_step_bytes + (4 << 20)          # double buffering + slack
    return int(min(max(need, 32 * 1024 * 1024), 64 * 1024 * 1024))


def _stat_index_map(num_t):
    def imap(i, t):
        return (i * num_t + t, 0, 0)
    return imap


# ---------------------------------------------------------------------------
# kernels
# ---------------------------------------------------------------------------

def _conv_body(x_ref, w_ref, *, offsets, th, w_out, ck, cout_p):
    """Shifted-window conv for one (image, row-band) grid step.

    x_ref: [1, Ht, Wt, ck]      bf16 resident (stride-folded, padded image)
    w_ref: [n_off, ck, cout_p]  bf16 resident weight slabs (one per offset)
    returns f32 [th * w_out, cout_p]
    """
    row0 = pl.program_id(1) * th
    acc = jnp.zeros((th * w_out, cout_p), jnp.float32)
    for k, (da, db) in enumerate(offsets):
        xs = x_ref[0, pl.ds(row0 + da, th), pl.ds(db, w_out), :]
        acc = acc + jnp.dot(xs.reshape(th * w_out, ck), w_ref[k],
                            preferred_element_type=jnp.float32)
    return acc


def _conv_stats_kernel(x_ref, w_ref, y_ref, sum_ref, sq_ref, *,
                       offsets, th, w_out, ck):
    """Conv tile + per-tile BN partial sums (sum, sum of squares)."""
    cout_p = y_ref.shape[-1]
    acc = _conv_body(x_ref, w_ref, offsets=offsets, th=th, w_out=w_out,
                     ck=ck, cout_p=cout_p)
    y_ref[0] = acc.astype(y_ref.dtype)                       # bf16 intermediate
    s = jnp.sum(acc, axis=0)                                 # [cout_p]
    q = jnp.sum(acc * acc, axis=0)                           # [cout_p]
    sum_ref[...] = jnp.broadcast_to(s[None, None, :], sum_ref.shape)
    sq_ref[...] = jnp.broadcast_to(q[None, None, :], sq_ref.shape)


def _conv_lrelu_kernel(x_ref, w_ref, o_ref, *, offsets, th, w_out, ck,
                       negative_slope):
    """use_norm=False path: conv + LeakyReLU fused into a single pass."""
    cout_p = o_ref.shape[-1]
    acc = _conv_body(x_ref, w_ref, offsets=offsets, th=th, w_out=w_out,
                     ck=ck, cout_p=cout_p)
    o_ref[0] = jnp.where(acc >= 0, acc, negative_slope * acc).astype(o_ref.dtype)


def _affine_lrelu_kernel(y_ref, scale_ref, shift_ref, o_ref, *, negative_slope):
    """Pass 2: fused BN (y*scale + shift) followed by LeakyReLU."""
    y = y_ref[0].astype(jnp.float32) * scale_ref[...] + shift_ref[...]
    o_ref[0] = jnp.where(y >= 0, y, negative_slope * y)


# ---------------------------------------------------------------------------
# wrapper
# ---------------------------------------------------------------------------

def _prepare_conv_operands(x_nhwc, weight_oihw, stride, w_out_pad, cout_p):
    """Reflect-pad + stride-fold the image and reorganize weights into
    per-offset slabs.  All O(input-bytes) layout work - no im2col expansion."""
    n, h, w, cin = x_nhwc.shape
    cout = weight_oihw.shape[0]
    kh = 4
    h_out = (h + 2 - kh) // stride + 1
    w_out = (w + 2 - kh) // stride + 1

    xp = jnp.pad(x_nhwc, ((0, 0), (1, 1), (1, 1), (0, 0)), mode="reflect")
    wt = jnp.transpose(weight_oihw, (2, 3, 1, 0))            # [kh, kw, cin, cout]

    if stride == 2:
        ht, wt_dim = h_out + 1, w_out + 1
        xp = xp[:, :2 * ht, :2 * wt_dim, :]
        # space-to-depth: xs[n, A, B, (p*2+q)*cin + c] = xp[n, 2A+p, 2B+q, c]
        xs = xp.reshape(n, ht, 2, wt_dim, 2, cin)
        xs = xs.transpose(0, 1, 3, 2, 4, 5).reshape(n, ht, wt_dim, 4 * cin)
        # wk[2a+b, (p*2+q)*cin + c, o] = w[o, c, 2a+p, 2b+q]
        wk = wt.reshape(2, 2, 2, 2, cin, cout).transpose(0, 2, 1, 3, 4, 5)
        wk = wk.reshape(4, 4 * cin, cout)
        offsets = tuple((a, b) for a in range(2) for b in range(2))
        ck = 4 * cin
    else:
        xs = xp                                              # Ht=h_out+3, Wt=w_out+3
        wk = wt.reshape(16, cin, cout)                       # wk[4i+j, c, o]
        offsets = tuple((i, j) for i in range(4) for j in range(4))
        ck = cin

    # zero-pad the W axis so th*w_out_pad is always sublane aligned; the extra
    # columns read zeros -> contribute nothing to conv or BN sums.
    extra_w = w_out_pad - w_out
    if extra_w:
        xs = jnp.pad(xs, ((0, 0), (0, 0), (0, extra_w), (0, 0)))
    xs = xs.astype(jnp.bfloat16)
    wk = jnp.pad(wk, ((0, 0), (0, 0), (0, cout_p - cout))).astype(jnp.bfloat16)
    return xs, wk, offsets, ck


def down_block_nhwc(x_nhwc, weight_oihw, gamma=None, beta=None, *,
                    last_layer=False, use_norm=True, eps=1e-5,
                    negative_slope=0.2):
    """DownBlock forward on NHWC activations (TPU-native layout).

    x_nhwc:      [N, H, W, Cin]     float32
    weight_oihw: [Cout, Cin, 4, 4]  float32 (PyTorch conv weight layout)
    gamma, beta: [Cout]             float32 (BatchNorm affine), used if use_norm
    returns:     [N, H_out, W_out, Cout] float32
    """
    stride = 1 if last_layer else 2
    n, h, w, cin = x_nhwc.shape
    cout = weight_oihw.shape[0]
    cout_p = _round_up(cout, 128)
    kh = 4
    h_out = (h + 2 - kh) // stride + 1
    w_out = (w + 2 - kh) // stride + 1
    w_out_pad = _round_up(w_out, 8)

    xs, wk, offsets, ck = _prepare_conv_operands(
        x_nhwc, weight_oihw, stride, w_out_pad, cout_p)
    n_off = len(offsets)
    ht, wt_dim = xs.shape[1], xs.shape[2]

    th = _pick_row_tile(h_out, w_out_pad)
    num_t = h_out // th
    rows = th * w_out_pad
    m = n * h_out * w_out                                    # true element count
    m_pad = n * h_out * w_out_pad
    kdim = n_off * ck
    grid = (n, num_t)

    x_spec = pl.BlockSpec((1, ht, wt_dim, ck), lambda i, t: (i, 0, 0, 0))
    w_spec = pl.BlockSpec((n_off, ck, cout_p), lambda i, t: (0, 0, 0))
    y_spec = pl.BlockSpec((1, rows, cout_p), lambda i, t: (i, t, 0))

    # per-grid-step VMEM tiles (roughly lane/sublane padded) -> vmem limit hint
    step_bytes = (ht * _round_up(wt_dim, 8) * _round_up(ck, 128) * 2
                  + n_off * _round_up(ck, 8) * cout_p * 2
                  + rows * cout_p * (2 + 4)
                  + 2 * 8 * cout_p * 4)
    cparams = pltpu.CompilerParams(
        dimension_semantics=("parallel", "arbitrary"),
        vmem_limit_bytes=_vmem_limit(step_bytes))
    conv_cost = pl.CostEstimate(
        flops=2 * m_pad * kdim * cout_p, transcendentals=0,
        bytes_accessed=xs.size * 2 + wk.size * 2 + m_pad * cout_p * 2)

    if use_norm:
        stat_shape = jax.ShapeDtypeStruct((n * num_t, 8, cout_p), jnp.float32)
        stat_spec = pl.BlockSpec((1, 8, cout_p), _stat_index_map(num_t))
        y_conv, tile_sum, tile_sq = pl.pallas_call(
            functools.partial(_conv_stats_kernel, offsets=offsets, th=th,
                              w_out=w_out_pad, ck=ck),
            out_shape=(jax.ShapeDtypeStruct((n, h_out * w_out_pad, cout_p),
                                            jnp.bfloat16),
                       stat_shape, stat_shape),
            grid=grid,
            in_specs=[x_spec, w_spec],
            out_specs=(y_spec, stat_spec, stat_spec),
            compiler_params=cparams,
            cost_estimate=conv_cost,
        )(xs, wk)

        # tiny cross-tile reduction: batch stats -> per-channel scale / shift
        sum_c = jnp.sum(tile_sum[:, 0, :], axis=0)           # [cout_p]
        sq_c = jnp.sum(tile_sq[:, 0, :], axis=0)              # [cout_p]
        mean = sum_c / float(m)                                # divide by true M
        var = jnp.maximum(sq_c / float(m) - mean * mean, 0.0)  # biased (training)
        if gamma is None:
            gamma = jnp.ones((cout,), jnp.float32)
        if beta is None:
            beta = jnp.zeros((cout,), jnp.float32)
        gamma_p = jnp.pad(gamma.astype(jnp.float32), (0, cout_p - cout))
        beta_p = jnp.pad(beta.astype(jnp.float32), (0, cout_p - cout))
        inv_std = lax.rsqrt(var + eps)
        scale = (gamma_p * inv_std).reshape(1, cout_p)
        shift = (beta_p - mean * gamma_p * inv_std).reshape(1, cout_p)

        out3d = pl.pallas_call(
            functools.partial(_affine_lrelu_kernel,
                              negative_slope=negative_slope),
            out_shape=jax.ShapeDtypeStruct((n, h_out * w_out_pad, cout_p),
                                           jnp.float32),
            grid=grid,
            in_specs=[y_spec,
                      pl.BlockSpec((1, cout_p), lambda i, t: (0, 0)),
                      pl.BlockSpec((1, cout_p), lambda i, t: (0, 0))],
            out_specs=y_spec,
            compiler_params=cparams,
            cost_estimate=pl.CostEstimate(
                flops=3 * m_pad * cout_p, transcendentals=0,
                bytes_accessed=m_pad * cout_p * 6),
        )(y_conv, scale, shift)
    else:
        out3d = pl.pallas_call(
            functools.partial(_conv_lrelu_kernel, offsets=offsets, th=th,
                              w_out=w_out_pad, ck=ck,
                              negative_slope=negative_slope),
            out_shape=jax.ShapeDtypeStruct((n, h_out * w_out_pad, cout_p),
                                           jnp.float32),
            grid=grid,
            in_specs=[x_spec, w_spec],
            out_specs=y_spec,
            compiler_params=cparams,
            cost_estimate=conv_cost,
        )(xs, wk)

    out = out3d[:, :, :cout].reshape(n, h_out, w_out_pad, cout)
    return out[:, :, :w_out, :]


def down_block(x_nchw, weight_oihw, gamma=None, beta=None, **kwargs):
    """PyTorch-layout (NCHW) interface.  Prefer down_block_nhwc when chaining
    blocks to avoid the boundary layout transposes."""
    x_nhwc = jnp.transpose(x_nchw, (0, 2, 3, 1))
    out = down_block_nhwc(x_nhwc, weight_oihw, gamma, beta, **kwargs)
    return jnp.transpose(out, (0, 3, 1, 2))


# ---------------------------------------------------------------------------
# reference + self-test
# ---------------------------------------------------------------------------

def _reference(x, w, gamma=None, beta=None, *, last_layer=False, use_norm=True,
               eps=1e-5, negative_slope=0.2):
    """Pure-JAX f32 reference for the DownBlock forward (NCHW)."""
    stride = 1 if last_layer else 2
    xp = jnp.pad(x, ((0, 0), (0, 0), (1, 1), (1, 1)), mode="reflect")
    y = lax.conv_general_dilated(
        xp, w, window_strides=(stride, stride), padding="VALID",
        dimension_numbers=("NCHW", "OIHW", "NCHW"))
    if use_norm:
        mean = jnp.mean(y, axis=(0, 2, 3), keepdims=True)
        var = jnp.mean((y - mean) ** 2, axis=(0, 2, 3), keepdims=True)
        y = (y - mean) * lax.rsqrt(var + eps)
        y = y * gamma.reshape(1, -1, 1, 1) + beta.reshape(1, -1, 1, 1)
    return jnp.where(y >= 0, y, negative_slope * y)


if __name__ == "__main__":
    # Small, module-consistent shapes: batch=2, in_channels=4, spatial=16,
    # out_channels=8.
    in_channels, out_channels = 4, 8
    key = jax.random.PRNGKey(0)
    kx, kw_, kg, kb = jax.random.split(key, 4)

    x = jax.random.normal(kx, (2, in_channels, 16, 16), dtype=jnp.float32)
    weight = 0.1 * jax.random.normal(
        kw_, (out_channels, in_channels, 4, 4), dtype=jnp.float32)
    gamma = 1.0 + 0.1 * jax.random.normal(kg, (out_channels,), dtype=jnp.float32)
    beta = 0.1 * jax.random.normal(kb, (out_channels,), dtype=jnp.float32)

    # default DownBlock: stride 2, BatchNorm (batch stats), LeakyReLU(0.2)
    y = down_block(x, weight, gamma, beta)
    jax.block_until_ready(y)
    assert y.shape == (2, out_channels, 8, 8), y.shape
    y_ref = _reference(x, weight, gamma, beta)
    err = float(jnp.max(jnp.abs(y - y_ref)))
    assert err < 0.25, f"max abs error {err}"     # bf16 MXU, f32 accumulate

    # last-layer variant: stride 1, no norm (fused single-pass conv+LReLU path)
    y2 = down_block(x, weight, last_layer=True, use_norm=False)
    jax.block_until_ready(y2)
    assert y2.shape == (2, out_channels, 15, 15), y2.shape
    y2_ref = _reference(x, weight, last_layer=True, use_norm=False)
    err2 = float(jnp.max(jnp.abs(y2 - y2_ref)))
    assert err2 < 0.1, f"max abs error {err2}"

    print("KERNEL_OK")
</pallas_src>

<mosaic_0001>
module attributes {stable_mosaic.version = 11 : i64} {
  func.func @_conv_stats_kernel(%arg0: i32, %arg1: i32, %arg2: memref<1x9x9x16xbf16, #tpu.memory_space<vmem>>, %arg3: memref<4x16x128xbf16, #tpu.memory_space<vmem>>, %arg4: memref<1x64x128xbf16, #tpu.memory_space<vmem>>, %arg5: memref<1x8x128xf32, #tpu.memory_space<vmem>>, %arg6: memref<1x8x128xf32, #tpu.memory_space<vmem>>) attributes {dimension_semantics = [#tpu.dimension_semantics<parallel>, #tpu.dimension_semantics<arbitrary>], iteration_bounds = array<i64: 2, 1>, scalar_prefetch = 0 : i64, scratch_operands = 0 : i64, tpu.core_type = #tpu.core_type<tc>, window_params = [{transform_indices = @transform_0, window_bounds = array<i64: 1, 9, 9, 16>}, {pipeline_mode = #tpu.pipeline_mode<synchronous>, transform_indices = @transform_1, window_bounds = array<i64: 4, 16, 128>}, {transform_indices = @transform_2, window_bounds = array<i64: 1, 64, 128>}, {transform_indices = @transform_3, window_bounds = array<i64: 1, 8, 128>}, {transform_indices = @transform_4, window_bounds = array<i64: 1, 8, 128>}]} {
    %c8_i32 = arith.constant 8 : i32
    %0 = arith.muli %arg1, %c8_i32 : i32
    %cst = arith.constant 0.000000e+00 : f32
    %1 = vector.broadcast %cst : f32 to vector<64x128xf32>
    %c0_i32 = arith.constant 0 : i32
    %2 = arith.addi %0, %c0_i32 : i32
    %c0 = arith.constant 0 : index
    %3 = arith.index_cast %2 : i32 to index
    %c0_0 = arith.constant 0 : index
    %c0_1 = arith.constant 0 : index
    %4 = vector.load %arg2[%c0, %3, %c0_0, %c0_1] : memref<1x9x9x16xbf16, #tpu.memory_space<vmem>>, vector<1x8x8x16xbf16>
    %5 = vector.shape_cast %4 : vector<1x8x8x16xbf16> to vector<8x8x16xbf16>
    %6 = vector.shape_cast %5 : vector<8x8x16xbf16> to vector<64x16xbf16>
    %c0_2 = arith.constant 0 : index
    %c0_3 = arith.constant 0 : index
    %c0_4 = arith.constant 0 : index
    %7 = vector.load %arg3[%c0_2, %c0_3, %c0_4] : memref<4x16x128xbf16, #tpu.memory_space<vmem>>, vector<1x16x128xbf16>
    %8 = vector.shape_cast %7 : vector<1x16x128xbf16> to vector<16x128xbf16>
    %cst_5 = arith.constant dense<0.000000e+00> : vector<64x128xf32>
    %9 = tpu.matmul %6, %8, %cst_5 {dimension_numbers = #tpu.dot_dimension_numbers<[1], [0], [0], [1], [0, 0, 1, 1], [], []>} : vector<64x16xbf16>, vector<16x128xbf16>, vector<64x128xf32> -> vector<64x128xf32>
    %10 = arith.addf %1, %9 : vector<64x128xf32>
    %c0_i32_6 = arith.constant 0 : i32
    %11 = arith.addi %0, %c0_i32_6 : i32
    %c0_7 = arith.constant 0 : index
    %12 = arith.index_cast %11 : i32 to index
    %c1 = arith.constant 1 : index
    %c0_8 = arith.constant 0 : index
    %13 = vector.load %arg2[%c0_7, %12, %c1, %c0_8] : memref<1x9x9x16xbf16, #tpu.memory_space<vmem>>, vector<1x8x8x16xbf16>
    %14 = vector.shape_cast %13 : vector<1x8x8x16xbf16> to vector<8x8x16xbf16>
    %15 = vector.shape_cast %14 : vector<8x8x16xbf16> to vector<64x16xbf16>
    %c1_9 = arith.constant 1 : index
    %c0_10 = arith.constant 0 : index
    %c0_11 = arith.constant 0 : index
    %16 = vector.load %arg3[%c1_9, %c0_10, %c0_11] : memref<4x16x128xbf16, #tpu.memory_space<vmem>>, vector<1x16x128xbf16>
    %17 = vector.shape_cast %16 : vector<1x16x128xbf16> to vector<16x128xbf16>
    %cst_12 = arith.constant dense<0.000000e+00> : vector<64x128xf32>
    %18 = tpu.matmul %15, %17, %cst_12 {dimension_numbers = #tpu.dot_dimension_numbers<[1], [0], [0], [1], [0, 0, 1, 1], [], []>} : vector<64x16xbf16>, vector<16x128xbf16>, vector<64x128xf32> -> vector<64x128xf32>
    %19 = arith.addf %10, %18 : vector<64x128xf32>
    %c1_i32 = arith.constant 1 : i32
    %20 = arith.addi %0, %c1_i32 : i32
    %c0_13 = arith.constant 0 : index
    %21 = arith.index_cast %20 : i32 to index
    %c0_14 = arith.constant 0 : index
    %c0_15 = arith.constant 0 : index
    %22 = vector.load %arg2[%c0_13, %21, %c0_14, %c0_15] : memref<1x9x9x16xbf16, #tpu.memory_space<vmem>>, vector<1x8x8x16xbf16>
    %23 = vector.shape_cast %22 : vector<1x8x8x16xbf16> to vector<8x8x16xbf16>
    %24 = vector.shape_cast %23 : vector<8x8x16xbf16> to vector<64x16xbf16>
    %c2 = arith.constant 2 : index
    %c0_16 = arith.constant 0 : index
    %c0_17 = arith.constant 0 : index
    %25 = vector.load %arg3[%c2, %c0_16, %c0_17] : memref<4x16x128xbf16, #tpu.memory_space<vmem>>, vector<1x16x128xbf16>
    %26 = vector.shape_cast %25 : vector<1x16x128xbf16> to vector<16x128xbf16>
    %cst_18 = arith.constant dense<0.000000e+00> : vector<64x128xf32>
    %27 = tpu.matmul %24, %26, %cst_18 {dimension_numbers = #tpu.dot_dimension_numbers<[1], [0], [0], [1], [0, 0, 1, 1], [], []>} : vector<64x16xbf16>, vector<16x128xbf16>, vector<64x128xf32> -> vector<64x128xf32>
    %28 = arith.addf %19, %27 : vector<64x128xf32>
    %c1_i32_19 = arith.constant 1 : i32
    %29 = arith.addi %0, %c1_i32_19 : i32
    %c0_20 = arith.constant 0 : index
    %30 = arith.index_cast %29 : i32 to index
    %c1_21 = arith.constant 1 : index
    %c0_22 = arith.constant 0 : index
    %31 = vector.load %arg2[%c0_20, %30, %c1_21, %c0_22] : memref<1x9x9x16xbf16, #tpu.memory_space<vmem>>, vector<1x8x8x16xbf16>
    %32 = vector.shape_cast %31 : vector<1x8x8x16xbf16> to vector<8x8x16xbf16>
    %33 = vector.shape_cast %32 : vector<8x8x16xbf16> to vector<64x16xbf16>
    %c3 = arith.constant 3 : index
    %c0_23 = arith.constant 0 : index
    %c0_24 = arith.constant 0 : index
    %34 = vector.load %arg3[%c3, %c0_23, %c0_24] : memref<4x16x128xbf16, #tpu.memory_space<vmem>>, vector<1x16x128xbf16>
    %35 = vector.shape_cast %34 : vector<1x16x128xbf16> to vector<16x128xbf16>
    %cst_25 = arith.constant dense<0.000000e+00> : vector<64x128xf32>
    %36 = tpu.matmul %33, %35, %cst_25 {dimension_numbers = #tpu.dot_dimension_numbers<[1], [0], [0], [1], [0, 0, 1, 1], [], []>} : vector<64x16xbf16>, vector<16x128xbf16>, vector<64x128xf32> -> vector<64x128xf32>
    %37 = arith.addf %28, %36 : vector<64x128xf32>
    %38 = arith.truncf %37 : vector<64x128xf32> to vector<64x128xbf16>
    %c0_26 = arith.constant 0 : index
    %c0_27 = arith.constant 0 : index
    %c0_28 = arith.constant 0 : index
    %39 = vector.load %arg4[%c0_26, %c0_27, %c0_28] : memref<1x64x128xbf16, #tpu.memory_space<vmem>>, vector<1x64x128xbf16>
    %40 = vector.shape_cast %39 : vector<1x64x128xbf16> to vector<64x128xbf16>
    %41 = vector.shape_cast %38 : vector<64x128xbf16> to vector<1x64x128xbf16>
    tpu.vector_store %arg4[%c0_26, %c0_27, %c0_28], %41 {strides = array<i32>} : memref<1x64x128xbf16, #tpu.memory_space<vmem>>, vector<1x64x128xbf16>,
    %cst_29 = arith.constant dense<0.000000e+00> : vector<128xf32>
    %42 = vector.multi_reduction <add>, %37, %cst_29 [0] : vector<64x128xf32> to vector<128xf32>
    %43 = arith.mulf %37, %37 : vector<64x128xf32>
    %cst_30 = arith.constant dense<0.000000e+00> : vector<128xf32>
    %44 = vector.multi_reduction <add>, %43, %cst_30 [0] : vector<64x128xf32> to vector<128xf32>
    %45 = vector.shape_cast %42 : vector<128xf32> to vector<1x1x128xf32>
    %46 = vector.shape_cast %45 : vector<1x1x128xf32> to vector<1x1x128xf32>
    %47 = vector.broadcast %46 : vector<1x1x128xf32> to vector<1x8x128xf32>
    %c0_31 = arith.constant 0 : index
    %c0_32 = arith.constant 0 : index
    %c0_33 = arith.constant 0 : index
    %48 = vector.load %arg5[%c0_31, %c0_32, %c0_33] : memref<1x8x128xf32, #tpu.memory_space<vmem>>, vector<1x8x128xf32>
    tpu.vector_store %arg5[%c0_31, %c0_32, %c0_33], %47 {strides = array<i32>} : memref<1x8x128xf32, #tpu.memory_space<vmem>>, vector<1x8x128xf32>,
    %49 = vector.shape_cast %44 : vector<128xf32> to vector<1x1x128xf32>
    %50 = vector.shape_cast %49 : vector<1x1x128xf32> to vector<1x1x128xf32>
    %51 = vector.broadcast %50 : vector<1x1x128xf32> to vector<1x8x128xf32>
    %c0_34 = arith.constant 0 : index
    %c0_35 = arith.constant 0 : index
    %c0_36 = arith.constant 0 : index
    %52 = vector.load %arg6[%c0_34, %c0_35, %c0_36] : memref<1x8x128xf32, #tpu.memory_space<vmem>>, vector<1x8x128xf32>
    tpu.vector_store %arg6[%c0_34, %c0_35, %c0_36], %51 {strides = array<i32>} : memref<1x8x128xf32, #tpu.memory_space<vmem>>, vector<1x8x128xf32>,
    return
  }
  func.func @transform_0(%arg0: i32, %arg1: i32) -> (i32, i32, i32, i32) {
    %c0_i32 = arith.constant 0 : i32
    %c0_i32_0 = arith.constant 0 : i32
    %c0_i32_1 = arith.constant 0 : i32
    %c0_i32_2 = arith.constant 0 : i32
    return %arg0, %c0_i32, %c0_i32_0, %c0_i32_1 : i32, i32, i32, i32
  }
  func.func @transform_1(%arg0: i32, %arg1: i32) -> (i32, i32, i32) {
    %c0_i32 = arith.constant 0 : i32
    %c0_i32_0 = arith.constant 0 : i32
    %c0_i32_1 = arith.constant 0 : i32
    %c0_i32_2 = arith.constant 0 : i32
    return %c0_i32, %c0_i32_0, %c0_i32_1 : i32, i32, i32
  }
  func.func @transform_2(%arg0: i32, %arg1: i32) -> (i32, i32, i32) {
    %c0_i32 = arith.constant 0 : i32
    %c0_i32_0 = arith.constant 0 : i32
    return %arg0, %arg1, %c0_i32 : i32, i32, i32
  }
  func.func @transform_3(%arg0: i32, %arg1: i32) -> (i32, i32, i32) {
    %c1_i32 = arith.constant 1 : i32
    %0 = arith.muli %arg0, %c1_i32 : i32
    %1 = arith.addi %0, %arg1 : i32
    %c0_i32 = arith.constant 0 : i32
    %c0_i32_0 = arith.constant 0 : i32
    %c0_i32_1 = arith.constant 0 : i32
    return %1, %c0_i32, %c0_i32_0 : i32, i32, i32
  }
  func.func @transform_4(%arg0: i32, %arg1: i32) -> (i32, i32, i32) {
    %c1_i32 = arith.constant 1 : i32
    %0 = arith.muli %arg0, %c1_i32 : i32
    %1 = arith.addi %0, %arg1 : i32
    %c0_i32 = arith.constant 0 : i32
    %c0_i32_0 = arith.constant 0 : i32
    %c0_i32_1 = arith.constant 0 : i32
    return %1, %c0_i32, %c0_i32_0 : i32, i32, i32
  }
}

</mosaic_0001>

<llo_original>
// kernel: tpu_custom_call.1
$region0: #{tpu_custom_call.1}
  #allocation0 [shape = 'u32[]', space=smem, size = 0x4, offset = 0x4, fixed_abs, tag = 'smem constant byte address 0x4 - core index']
  #allocation1 [shape = 'u32[144,128]{1,0:T(1,128)}', space=vmem, size = 0x12000, scoped, tag = 'internal scratch']
  %s0 = inlined_call_operand.vmem [shape: bf16[2,9,9,16], index: 0, kind: input, shape index: {}]
  %s1 = inlined_call_operand.vmem [shape: bf16[4,16,128], index: 1, kind: input, shape index: {}]
  %s2 = inlined_call_operand.hbm [shape: bf16[2,64,128], index: 2, kind: output, shape index: {0}]
  %s3 = inlined_call_operand.hbm [shape: f32[2,8,128], index: 3, kind: output, shape index: {1}]
  %s4 = inlined_call_operand.hbm [shape: f32[2,8,128], index: 4, kind: output, shape index: {2}]
  %5 = xla_tuple %s2, %s3, %s4
  %s6 = sld [smem:[#allocation0]]
  $region57: #{tpu_custom_call.1} parent=0
    _
  %s8 = ssub.s32 1, %s6
  %s9 = scalar_select 0, %s8, %s6
  $region1: #{tpu_custom_call.1} parent=0
    #allocation2 [shape = 'u8[32768]{0}', space=vmem, size = 0x8000, scoped, tag = 'output window, operand 0']
    #allocation3 [shape = 's32[2]{0}', space=sflag, size = 0x8, scoped, tag = 'scoped memory for tpu_custom_call.1']
    #allocation4 [shape = 'u8[8192]{0}', space=vmem, size = 0x2000, scoped, tag = 'output window, operand 1']
    #allocation5 [shape = 's32[2]{0}', space=sflag, size = 0x8, scoped, tag = 'scoped memory for tpu_custom_call.1']
    #allocation6 [shape = 'u8[8192]{0}', space=vmem, size = 0x2000, scoped, tag = 'output window, operand 2']
    %10 = vsyncpa [#allocation3], 0
    %s11 = scalar_lea.sflag [#allocation3], 1
    %12 = vsyncpa %s11, 0
    %13 = vsyncpa [#allocation5], 0
    %s14 = scalar_lea.sflag [#allocation5], 1
    %15 = vsyncpa %s14, 0
    loop: start=0, step=1, limit=4
    $region2: #{tpu_custom_call.1} parent=1 // loop_pre_header
      _
    $region3: #{tpu_custom_call.1} parent=1 // loop_header
      %s17 = sphi 0, %s21
      %p18 = scmp.ge.s32.totalorder %s17, 4
      %s24 = sphi 0, %s36
      %s25 = sphi 0, %s32
      %s26 = sphi 0, %s24
      %s27 = sphi 0, %s25
      %s28 = sphi 0, %s26
      %s29 = sphi 0, %s27
      %s39 = sphi 0, %s41
      %s42 = sphi 0, %s39
      %s43 = sphi 0, %s42
      %s59 = sphi 0, %s43
      %s63 = sphi 0, %s63
      %s65 = sphi 0, %s63
      %s66 = sphi 0, %s65
      %s80 = sphi 0, %s66
      %s88 = sphi 0, %s90
      %s91 = sphi 0, %s88
      %s92 = sphi 0, %s91
      %s108 = sphi 0, %s92
      %s116 = sphi 0, %s118
      %s119 = sphi 0, %s116
      %s120 = sphi 0, %s119
      %s136 = sphi 0, %s120
      %s144 = sphi 0, %s146
      %s147 = sphi 0, %s144
      %s148 = sphi 0, %s147
      %s164 = sphi 0, %s148
    $region4: #{tpu_custom_call.1} parent=1 // loop_header_branch
      %20 = sbr.rel (%p18) target = $region8
    $region5: #{tpu_custom_call.1} parent=1 // loop_body
      %s22 = ssub.s32 %s17, 1
      %s23 = ssub.s32 %s17, 2
      %s30 = sadd.s32 1, %s25
      %p31 = scmp.ge.s32.totalorder %s30, 1
      %s32 = scalar_select %p31, 0, %s30
      %s33 = sadd.s32 1, %s24
      %s34 = scalar_select %p31, %s33, %s24
      %p35 = scmp.ge.s32.totalorder %s34, 2
      %s36 = scalar_select %p35, 0, %s34
      %s37 = ssub.s32 %s24, %s36
      %p38 = scmp.eq.s32.totalorder %s37, 0
      %s40 = sadd.s32 %s39, 1
      %s41 = scalar_select %p38, %s39, %s40
      %p44 = pneg %p38
      %p45 = scmp.eq.s32.totalorder %s17, 1
      %p46 = por %p44, %p45
      %p47 = scmp.ne.s32.totalorder %s39, %s42
      %p48 = scmp.eq.s32.totalorder %s17, 0
      %p49 = por %p47, %p48
      %p50 = scmp.ne.s32.totalorder %s39, %s42
      %p51 = scmp.eq.s32.totalorder %s22, 1
      %p52 = por %p50, %p51
      %p53 = scmp.ne.s32.totalorder %s42, %s43
      %p54 = scmp.eq.s32.totalorder %s22, 0
      %p55 = por %p53, %p54
      %p56 = scmp.ne.s32.totalorder %s42, %s43
      %p57 = scmp.eq.s32.totalorder %s23, 1
      %p58 = por %p56, %p57
      %p60 = scmp.ne.s32.totalorder %s43, %s59
      %p61 = scmp.eq.s32.totalorder %s23, 0
      %p62 = por %p60, %p61
      %s64 = sadd.s32 %s63, 1
      %p67 = scmp.eq.s32.totalorder %s17, 1
      %p68 = scmp.ne.s32.totalorder %s63, %s65
      %p69 = scmp.eq.s32.totalorder %s17, 0
      %p70 = por %p68, %p69
      %p71 = scmp.ne.s32.totalorder %s63, %s65
      %p72 = scmp.eq.s32.totalorder %s22, 1
      %p73 = por %p71, %p72
      %p74 = scmp.ne.s32.totalorder %s65, %s66
      %p75 = scmp.eq.s32.totalorder %s22, 0
      %p76 = por %p74, %p75
      %p77 = scmp.ne.s32.totalorder %s65, %s66
      %p78 = scmp.eq.s32.totalorder %s23, 1
      %p79 = por %p77, %p78
      %p81 = scmp.ne.s32.totalorder %s66, %s80
      %p82 = scmp.eq.s32.totalorder %s23, 0
      %p83 = por %p81, %p82
      %s84 = ssub.s32 %s24, %s36
      %s85 = ssub.s32 %s25, %s32
      %s86 = sor.u32 %s84, %s85
      %p87 = scmp.eq.s32.totalorder %s86, 0
      %s89 = sadd.s32 %s88, 1
      %s90 = scalar_select %p87, %s88, %s89
      %p93 = pneg %p87
      %p94 = scmp.eq.s32.totalorder %s17, 1
      %p95 = por %p93, %p94
      %p96 = scmp.ne.s32.totalorder %s88, %s91
      %p97 = scmp.eq.s32.totalorder %s17, 0
      %p98 = por %p96, %p97
      %p99 = scmp.ne.s32.totalorder %s88, %s91
      %p100 = scmp.eq.s32.totalorder %s22, 1
      %p101 = por %p99, %p100
      %p102 = scmp.ne.s32.totalorder %s91, %s92
      %p103 = scmp.eq.s32.totalorder %s22, 0
      %p104 = por %p102, %p103
      %p105 = scmp.ne.s32.totalorder %s91, %s92
      %p106 = scmp.eq.s32.totalorder %s23, 1
      %p107 = por %p105, %p106
      %p109 = scmp.ne.s32.totalorder %s92, %s108
      %p110 = scmp.eq.s32.totalorder %s23, 0
      %p111 = por %p109, %p110
      %s112 = sadd.s32 %s24, %s25
      %s113 = sadd.s32 %s36, %s32
      %s114 = ssub.s32 %s112, %s113
      %p115 = scmp.eq.s32.totalorder %s114, 0
      %s117 = sadd.s32 %s116, 1
      %s118 = scalar_select %p115, %s116, %s117
      %p121 = pneg %p115
      %p122 = scmp.eq.s32.totalorder %s17, 1
      %p123 = por %p121, %p122
      %p124 = scmp.ne.s32.totalorder %s116, %s119
      %p125 = scmp.eq.s32.totalorder %s17, 0
      %p126 = por %p124, %p125
      %p127 = scmp.ne.s32.totalorder %s116, %s119
      %p128 = scmp.eq.s32.totalorder %s22, 1
      %p129 = por %p127, %p128
      %p130 = scmp.ne.s32.totalorder %s119, %s120
      %p131 = scmp.eq.s32.totalorder %s22, 0
      %p132 = por %p130, %p131
      %p133 = scmp.ne.s32.totalorder %s119, %s120
      %p134 = scmp.eq.s32.totalorder %s23, 1
      %p135 = por %p133, %p134
      %p137 = scmp.ne.s32.totalorder %s120, %s136
      %p138 = scmp.eq.s32.totalorder %s23, 0
      %p139 = por %p137, %p138
      %s140 = sadd.s32 %s24, %s25
      %s141 = sadd.s32 %s36, %s32
      %s142 = ssub.s32 %s140, %s141
      %p143 = scmp.eq.s32.totalorder %s142, 0
      %s145 = sadd.s32 %s144, 1
      %s146 = scalar_select %p143, %s144, %s145
      %p149 = pneg %p143
      %p150 = scmp.eq.s32.totalorder %s17, 1
      %p151 = por %p149, %p150
      %p152 = scmp.ne.s32.totalorder %s144, %s147
      %p153 = scmp.eq.s32.totalorder %s17, 0
      %p154 = por %p152, %p153
      %p155 = scmp.ne.s32.totalorder %s144, %s147
      %p156 = scmp.eq.s32.totalorder %s22, 1
      %p157 = por %p155, %p156
      %p158 = scmp.ne.s32.totalorder %s147, %s148
      %p159 = scmp.eq.s32.totalorder %s22, 0
      %p160 = por %p158, %p159
      %p161 = scmp.ne.s32.totalorder %s147, %s148
      %p162 = scmp.eq.s32.totalorder %s23, 1
      %p163 = por %p161, %p162
      %p165 = scmp.ne.s32.totalorder %s148, %s164
      %p166 = scmp.eq.s32.totalorder %s23, 0
      %p167 = por %p165, %p166
      %p168 = scmp.le.s32.totalorder 1, %s17
      %p169 = scmp.lt.s32.totalorder %s17, 3
      %p170 = pnand %p168, %p169
      %p171 = pneg %p170
      // Predicated region
      $region9: #{tpu_custom_call.1} parent=5 // pred_check
        _
      $region10: #{tpu_custom_call.1} parent=5 // pred_check_branch
        %173 = sbr.rel (%p170) target = $region12
      $region11: #{tpu_custom_call.1} parent=5 // pred_region
        %s174 = ssub.s32 %s17, 1
        // Predicated region
        $region13: #{tpu_custom_call.1} parent=11 // pred_check
          %p175 = pneg %p76
        $region14: #{tpu_custom_call.1} parent=11 // pred_check_branch
          %177 = sbr.rel (%p175) target = $region16
        $region15: #{tpu_custom_call.1} parent=11 // pred_region
          _
        $region16: #{tpu_custom_call.1} parent=11 // pred_fallthru
          _
      $region12: #{tpu_custom_call.1} parent=5 // pred_fallthru
        _
      %p178 = scmp.lt.s32.totalorder %s17, 2
      // Predicated region
      $region17: #{tpu_custom_call.1} parent=5 // pred_check
        %p179 = pneg %p178
      $region18: #{tpu_custom_call.1} parent=5 // pred_check_branch
        %181 = sbr.rel (%p179) target = $region20
      $region19: #{tpu_custom_call.1} parent=5 // pred_region
        // Predicated region
        $region21: #{tpu_custom_call.1} parent=19 // pred_check
          %p182 = pneg %p49
        $region22: #{tpu_custom_call.1} parent=19 // pred_check_branch
          %184 = sbr.rel (%p182) target = $region24
        $region23: #{tpu_custom_call.1} parent=19 // pred_region
          %p185 = scmp.lt.s32.totalorder %s24, 1
          %s186 = scalar_select %p185, %s24, 1
          %s187 = smul.addr %s186, 18
          %s188 = smul.addr %s187, 4
          %s189 = scalar_lea.vmem %s0, %s188
        $region24: #{tpu_custom_call.1} parent=19 // pred_fallthru
          _
      $region20: #{tpu_custom_call.1} parent=5 // pred_fallthru
        _
      %p190 = scmp.le.s32.totalorder 1, %s17
      %p191 = scmp.lt.s32.totalorder %s17, 3
      %p192 = pnand %p190, %p191
      %p193 = pneg %p192
      // Predicated region
      $region25: #{tpu_custom_call.1} parent=5 // pred_check
        _
      $region26: #{tpu_custom_call.1} parent=5 // pred_check_branch
        %195 = sbr.rel (%p192) target = $region28
      $region27: #{tpu_custom_call.1} parent=5 // pred_region
        %s196 = ssub.s32 %s17, 1
        %p197 = scmp.lt.s32.totalorder %s26, 1
        %s198 = scalar_select %p197, %s26, 1
        %s199 = smul.addr %s198, 18
        %s200 = smul.addr %s199, 4
        %s201 = scalar_lea.vmem %s0, %s200
        %p202 = pneg %p55
        %p203 = pneg %p52
        %p204 = pneg %p76
        %p205 = pneg %p73
        %p206 = pneg %p104
        %p207 = pneg %p101
        %s208 = sand.u32 %s91, 1
        %s209 = scalar_lea.sflag [#allocation3], %s208
        %s210 = sand.u32 %s91, 1
        %s211 = smul.addr %s210, 32
        %s212 = scalar_lea.vmem [#allocation2], %s211
        %p213 = pneg %p132
        %p214 = pneg %p129
        %s215 = sand.u32 %s22, 1
        %s216 = scalar_lea.sflag [#allocation5], %s215
        %s217 = sand.u32 %s119, 1
        %s218 = smul.addr %s217, 8
        %s219 = scalar_lea.vmem [#allocation4], %s218
        %p220 = pneg %p160
        %p221 = pneg %p157
        %s222 = sand.u32 %s22, 1
        %s223 = scalar_lea.sflag [#allocation5], %s222
        %s224 = sand.u32 %s147, 1
        %s225 = smul.addr %s224, 8
        %s226 = scalar_lea.vmem [#allocation6], %s225
        %p227 = scmp.lt.s32.totalorder %s26, 1
        %s228 = scalar_select %p227, %s26, 1
        %s229 = smul.addr %s228, 18
        %s230 = smul.addr %s229, 4
        %s231 = scalar_lea.vmem %s0, %s230
        %s232 = smul.u32 8, %s27
        %s233 = sadd.s32 %s26, %s27
        %s234 = sadd.s32 %s26, %s27
        %s236 = smul.u32 %s27, 8
        %s237 = smul.u32 %s236, 2
        %s238 = smul.addr %s237, 4
        %s239 = scalar_lea.vmem %s231, %s238
        %v240 = vld [vmem:[%s239] sm:$0xf]
        %v241 = vld [vmem:[%s239 + $0x8] sm:$0xf]
        %v242 = vld [vmem:[%s239 + $0x10] sm:$0xf]
        %v243 = vld [vmem:[%s239 + $0x18] sm:$0xf]
        %v244 = vld [vmem:[%s239 + $0x20] sm:$0xf]
        %v245 = vld [vmem:[%s239 + $0x28] sm:$0xf]
        %v246 = vld [vmem:[%s239 + $0x30] sm:$0xf]
        %v247 = vld [vmem:[%s239 + $0x38] sm:$0xf]
        %v248 = vld [vmem:[%s1] sm:$0xf]
        %v249 = vld [vmem:[%s1 + $0x4] sm:$0xf]
        %v250 = vld [vmem:[%s239 + $0x4] sm:$0x1]
        %v251 = vld [vmem:[%s239 + $0xc] sm:$0x1]
        %v252 = vld [vmem:[%s239 + $0x14] sm:$0x1]
        %v253 = vld [vmem:[%s239 + $0x1c] sm:$0x1]
        %v254 = vld [vmem:[%s239 + $0x24] sm:$0x1]
        %v255 = vld [vmem:[%s239 + $0x2c] sm:$0x1]
        %v256 = vld [vmem:[%s239 + $0x34] sm:$0x1]
        %v257 = vld [vmem:[%s239 + $0x3c] sm:$0x1]
        %vm258 = vsmask.f32 3328
        %vm259 = vsmask.f32 7440
        %vm260 = vmor %vm258, %vm259
        %v262 = vshrl.u32 %v240, 16
        %v264 = vrot.slane %v262, 4
        %v265 = vshll.u32 %v240, 16
        %v267 = vrot.slane %v265, 5
        %v268 = vor.u32 %v264, %v267
        %v269 = vrot.slane %v268, 4
        %v271 = vshll.u32 %v250, 16
        %v273 = vrot.slane %v271, 5
        %v274 = vsel %vm260, %v269, %v273
        %v276 = vshrl.u32 %v241, 16
        %v278 = vrot.slane %v276, 4
        %v279 = vshll.u32 %v241, 16
        %v281 = vrot.slane %v279, 5
        %v282 = vor.u32 %v278, %v281
        %v283 = vrot.slane %v282, 4
        %v285 = vshll.u32 %v251, 16
        %v287 = vrot.slane %v285, 5
        %v288 = vsel %vm260, %v283, %v287
        %v290 = vshrl.u32 %v242, 16
        %v292 = vrot.slane %v290, 4
        %v293 = vshll.u32 %v242, 16
        %v295 = vrot.slane %v293, 5
        %v296 = vor.u32 %v292, %v295
        %v297 = vrot.slane %v296, 4
        %v299 = vshll.u32 %v252, 16
        %v301 = vrot.slane %v299, 5
        %v302 = vsel %vm260, %v297, %v301
        %v304 = vshrl.u32 %v243, 16
        %v306 = vrot.slane %v304, 4
        %v307 = vshll.u32 %v243, 16
        %v309 = vrot.slane %v307, 5
        %v310 = vor.u32 %v306, %v309
        %v311 = vrot.slane %v310, 4
        %v313 = vshll.u32 %v253, 16
        %v315 = vrot.slane %v313, 5
        %v316 = vsel %vm260, %v311, %v315
        %v318 = vshrl.u32 %v244, 16
        %v320 = vrot.slane %v318, 4
        %v321 = vshll.u32 %v244, 16
        %v323 = vrot.slane %v321, 5
        %v324 = vor.u32 %v320, %v323
        %v325 = vrot.slane %v324, 4
        %v327 = vshll.u32 %v254, 16
        %v329 = vrot.slane %v327, 5
        %v330 = vsel %vm260, %v325, %v329
        %v332 = vshrl.u32 %v245, 16
        %v334 = vrot.slane %v332, 4
        %v335 = vshll.u32 %v245, 16
        %v337 = vrot.slane %v335, 5
        %v338 = vor.u32 %v334, %v337
        %v339 = vrot.slane %v338, 4
        %v341 = vshll.u32 %v255, 16
        %v343 = vrot.slane %v341, 5
        %v344 = vsel %vm260, %v339, %v343
        %v346 = vshrl.u32 %v246, 16
        %v348 = vrot.slane %v346, 4
        %v349 = vshll.u32 %v246, 16
        %v351 = vrot.slane %v349, 5
        %v352 = vor.u32 %v348, %v351
        %v353 = vrot.slane %v352, 4
        %v355 = vshll.u32 %v256, 16
        %v357 = vrot.slane %v355, 5
        %v358 = vsel %vm260, %v353, %v357
        %v360 = vshrl.u32 %v247, 16
        %v362 = vrot.slane %v360, 4
        %v363 = vshll.u32 %v247, 16
        %v365 = vrot.slane %v363, 5
        %v366 = vor.u32 %v362, %v365
        %v367 = vrot.slane %v366, 4
        %v369 = vshll.u32 %v257, 16
        %v371 = vrot.slane %v369, 5
        %v372 = vsel %vm260, %v367, %v371
        %s373 = scalar_lea.vmem %s1, 8
        %v374 = vld [vmem:[%s373] sm:$0xf]
        %v375 = vld [vmem:[%s373 + $0x4] sm:$0xf]
        %v376 = vunpack.c.l.b16 %v274
        %v377 = vunpack.c.l.b16 %v288
        %v378 = vunpack.c.l.b16 %v302
        %v379 = vunpack.c.l.b16 %v316
        %v380 = vunpack.c.l.b16 %v330
        %v381 = vunpack.c.l.b16 %v344
        %v382 = vunpack.c.l.b16 %v358
        %v383 = vunpack.c.l.b16 %v372
        %v384 = vpack.c.b16 %v377, %v376
        %v385 = vpack.c.b16 %v379, %v378
        %v386 = vpack.c.b16 %v381, %v380
        %v387 = vpack.c.b16 %v383, %v382
        %v390 = vunpack.c.l.b16 %v374
        %v391 = vunpack.c.l.b16 %v375
        %v392 = vpack.c.b16 %v391, %v390
        %vm394 = vcmask 130048
        %v396 = vsel %vm394, %v384, 0
        %v399 = vsel %vm394, %v385, 0
        %v402 = vsel %vm394, %v386, 0
        %v405 = vsel %vm394, %v387, 0
        %407 = vmatprep.subr.bf16.mxu0 0
        %408 = vmatpush1.bf16.msra.mxu0 %v392
        %409 = vmatprep.subr.bf16.mxu0 0
        %410 = vmatpush1.bf16.msra.mxu0 0
        %411 = vmatprep.subr.bf16.mxu0 0
        %412 = vmatpush1.bf16.msra.mxu0 0
        %413 = vmatprep.subr.bf16.mxu0 0
        %414 = vmatpush1.bf16.msra.mxu0 0
        %415 = vmatprep.subr.bf16.mxu0 0
        %416 = vmatpush1.bf16.msra.mxu0 0
        %417 = vmatprep.subr.bf16.mxu0 0
        %418 = vmatpush1.bf16.msra.mxu0 0
        %419 = vmatprep.subr.bf16.mxu0 0
        %420 = vmatpush1.bf16.msra.mxu0 0
        %421 = vmatprep.subr.bf16.mxu0 0
        %422 = vmatpush1.bf16.msra.mxu0 0
        %423 = vmatprep.subr.bf16.mxu0 0
        %424 = vmatpush1.bf16.msra.mxu0 0
        %425 = vmatprep.subr.bf16.mxu0 0
        %426 = vmatpush1.bf16.msra.mxu0 0
        %427 = vmatprep.subr.bf16.mxu0 0
        %428 = vmatpush1.bf16.msra.mxu0 0
        %429 = vmatprep.subr.bf16.mxu0 0
        %430 = vmatpush1.bf16.msra.mxu0 0
        %431 = vmatprep.subr.bf16.mxu0 0
        %432 = vmatpush1.bf16.msra.mxu0 0
        %433 = vmatprep.subr.bf16.mxu0 0
        %434 = vmatpush1.bf16.msra.mxu0 0
        %435 = vmatprep.subr.bf16.mxu0 0
        %436 = vmatpush1.bf16.msra.mxu0 0
        %437 = vmatprep.subr.bf16.mxu0 0
        %438 = vmatpush1.bf16.msra.mxu0 0
        %439 = vmatprep.mubr.bf16.mxu0 0
        %440 = vmatmul.mubr.bf16.gmra.mrb[0].mxu0 %v396
        %v441 = vpop.f32.mrb[0].mxu0
        %v442 = vadd.f32 0.0, %v441
        %v443 = vpop.f32.mrb[0].mxu0
        %v444 = vpop.f32.mrb[0].mxu0
        %v445 = vadd.f32 0.0, %v444
        %v446 = vpop.f32.mrb[0].mxu0
        %447 = vmatprep.mubr.bf16.mxu0 0
        %448 = vmatmul.mubr.bf16.gmra.mrb[0].mxu0 %v399
        %v449 = vpop.f32.mrb[0].mxu0
        %v450 = vadd.f32 0.0, %v449
        %v451 = vpop.f32.mrb[0].mxu0
        %v452 = vpop.f32.mrb[0].mxu0
        %v453 = vadd.f32 0.0, %v452
        %v454 = vpop.f32.mrb[0].mxu0
        %455 = vmatprep.mubr.bf16.mxu0 0
        %456 = vmatmul.mubr.bf16.gmra.mrb[0].mxu0 %v402
        %v457 = vpop.f32.mrb[0].mxu0
        %v458 = vadd.f32 0.0, %v457
        %v459 = vpop.f32.mrb[0].mxu0
        %v460 = vpop.f32.mrb[0].mxu0
        %v461 = vadd.f32 0.0, %v460
        %v462 = vpop.f32.mrb[0].mxu0
        %463 = vmatprep.mubr.bf16.mxu0 0
        %464 = vmatmul.mubr.bf16.gmra.mrb[0].mxu0 %v405
        %v465 = vpop.f32.mrb[0].mxu0
        %v466 = vadd.f32 0.0, %v465
        %v467 = vpop.f32.mrb[0].mxu0
        %v468 = vpop.f32.mrb[0].mxu0
        %v469 = vadd.f32 0.0, %v468
        %v470 = vpop.f32.mrb[0].mxu0
        %471 = vdwg.mxu0
        %v480 = vunpack.c.l.b16 %v240
        %v481 = vunpack.c.l.b16 %v241
        %v482 = vunpack.c.l.b16 %v242
        %v483 = vunpack.c.l.b16 %v243
        %v484 = vunpack.c.l.b16 %v244
        %v485 = vunpack.c.l.b16 %v245
        %v486 = vunpack.c.l.b16 %v246
        %v487 = vunpack.c.l.b16 %v247
        %v488 = vpack.c.b16 %v481, %v480
        %v489 = vpack.c.b16 %v483, %v482
        %v490 = vpack.c.b16 %v485, %v484
        %v491 = vpack.c.b16 %v487, %v486
        %v494 = vunpack.c.l.b16 %v248
        %v495 = vunpack.c.l.b16 %v249
        %v496 = vpack.c.b16 %v495, %v494
        %v499 = vsel %vm394, %v488, 0
        %v502 = vsel %vm394, %v489, 0
        %v505 = vsel %vm394, %v490, 0
        %v508 = vsel %vm394, %v491, 0
        %510 = vmatprep.subr.bf16.mxu0 0
        %511 = vmatpush1.bf16.msra.mxu0 %v496
        %512 = vmatprep.subr.bf16.mxu0 0
        %513 = vmatpush1.bf16.msra.mxu0 0
        %514 = vmatprep.subr.bf16.mxu0 0
        %515 = vmatpush1.bf16.msra.mxu0 0
        %516 = vmatprep.subr.bf16.mxu0 0
        %517 = vmatpush1.bf16.msra.mxu0 0
        %518 = vmatprep.subr.bf16.mxu0 0
        %519 = vmatpush1.bf16.msra.mxu0 0
        %520 = vmatprep.subr.bf16.mxu0 0
        %521 = vmatpush1.bf16.msra.mxu0 0
        %522 = vmatprep.subr.bf16.mxu0 0
        %523 = vmatpush1.bf16.msra.mxu0 0
        %524 = vmatprep.subr.bf16.mxu0 0
        %525 = vmatpush1.bf16.msra.mxu0 0
        %526 = vmatprep.subr.bf16.mxu0 0
        %527 = vmatpush1.bf16.msra.mxu0 0
        %528 = vmatprep.subr.bf16.mxu0 0
        %529 = vmatpush1.bf16.msra.mxu0 0
        %530 = vmatprep.subr.bf16.mxu0 0
        %531 = vmatpush1.bf16.msra.mxu0 0
        %532 = vmatprep.subr.bf16.mxu0 0
        %533 = vmatpush1.bf16.msra.mxu0 0
        %534 = vmatprep.subr.bf16.mxu0 0
        %535 = vmatpush1.bf16.msra.mxu0 0
        %536 = vmatprep.subr.bf16.mxu0 0
        %537 = vmatpush1.bf16.msra.mxu0 0
        %538 = vmatprep.subr.bf16.mxu0 0
        %539 = vmatpush1.bf16.msra.mxu0 0
        %540 = vmatprep.subr.bf16.mxu0 0
        %541 = vmatpush1.bf16.msra.mxu0 0
        %542 = vmatprep.mubr.bf16.mxu0 0
        %543 = vmatmul.mubr.bf16.gmra.mrb[0].mxu0 %v499
        %v544 = vpop.f32.mrb[0].mxu0
        %v545 = vadd.f32 %v442, %v544
        %v546 = vpop.f32.mrb[0].mxu0
        %v547 = vpop.f32.mrb[0].mxu0
        %v548 = vadd.f32 %v445, %v547
        %v549 = vpop.f32.mrb[0].mxu0
        %550 = vmatprep.mubr.bf16.mxu0 0
        %551 = vmatmul.mubr.bf16.gmra.mrb[0].mxu0 %v502
        %v552 = vpop.f32.mrb[0].mxu0
        %v553 = vadd.f32 %v450, %v552
        %v554 = vpop.f32.mrb[0].mxu0
        %v555 = vpop.f32.mrb[0].mxu0
        %v556 = vadd.f32 %v453, %v555
        %v557 = vpop.f32.mrb[0].mxu0
        %558 = vmatprep.mubr.bf16.mxu0 0
        %559 = vmatmul.mubr.bf16.gmra.mrb[0].mxu0 %v505
        %v560 = vpop.f32.mrb[0].mxu0
        %v561 = vadd.f32 %v458, %v560
        %v562 = vpop.f32.mrb[0].mxu0
        %v563 = vpop.f32.mrb[0].mxu0
        %v564 = vadd.f32 %v461, %v563
        %v565 = vpop.f32.mrb[0].mxu0
        %566 = vmatprep.mubr.bf16.mxu0 0
        %567 = vmatmul.mubr.bf16.gmra.mrb[0].mxu0 %v508
        %v568 = vpop.f32.mrb[0].mxu0
        %v569 = vadd.f32 %v466, %v568
        %v570 = vpop.f32.mrb[0].mxu0
        %v571 = vpop.f32.mrb[0].mxu0
        %v572 = vadd.f32 %v469, %v571
        %v573 = vpop.f32.mrb[0].mxu0
        %574 = vdwg.mxu0
        %s575 = sadd.s32 %s236, 1
        %s576 = smul.u32 %s575, 2
        %s577 = smul.addr %s576, 4
        %s578 = scalar_lea.vmem %s231, %s577
        %v579 = vld [vmem:[%s578] sm:$0xf]
        %v580 = vld [vmem:[%s578 + $0x8] sm:$0xf]
        %v581 = vld [vmem:[%s578 + $0x10] sm:$0xf]
        %v582 = vld [vmem:[%s578 + $0x18] sm:$0xf]
        %v583 = vld [vmem:[%s578 + $0x20] sm:$0xf]
        %v584 = vld [vmem:[%s578 + $0x28] sm:$0xf]
        %v585 = vld [vmem:[%s578 + $0x30] sm:$0xf]
        %v586 = vld [vmem:[%s578 + $0x38] sm:$0xf]
        %s587 = scalar_lea.vmem %s1, 16
        %v588 = vld [vmem:[%s587] sm:$0xf]
        %v589 = vld [vmem:[%s587 + $0x4] sm:$0xf]
        %v598 = vunpack.c.l.b16 %v579
        %v599 = vunpack.c.l.b16 %v580
        %v600 = vunpack.c.l.b16 %v581
        %v601 = vunpack.c.l.b16 %v582
        %v602 = vunpack.c.l.b16 %v583
        %v603 = vunpack.c.l.b16 %v584
        %v604 = vunpack.c.l.b16 %v585
        %v605 = vunpack.c.l.b16 %v586
        %v606 = vpack.c.b16 %v599, %v598
        %v607 = vpack.c.b16 %v601, %v600
        %v608 = vpack.c.b16 %v603, %v602
        %v609 = vpack.c.b16 %v605, %v604
        %v612 = vunpack.c.l.b16 %v588
        %v613 = vunpack.c.l.b16 %v589
        %v614 = vpack.c.b16 %v613, %v612
        %v617 = vsel %vm394, %v606, 0
        %v620 = vsel %vm394, %v607, 0
        %v623 = vsel %vm394, %v608, 0
        %v626 = vsel %vm394, %v609, 0
        %628 = vmatprep.subr.bf16.mxu0 0
        %629 = vmatpush1.bf16.msra.mxu0 %v614
        %630 = vmatprep.subr.bf16.mxu0 0
        %631 = vmatpush1.bf16.msra.mxu0 0
        %632 = vmatprep.subr.bf16.mxu0 0
        %633 = vmatpush1.bf16.msra.mxu0 0
        %634 = vmatprep.subr.bf16.mxu0 0
        %635 = vmatpush1.bf16.msra.mxu0 0
        %636 = vmatprep.subr.bf16.mxu0 0
        %637 = vmatpush1.bf16.msra.mxu0 0
        %638 = vmatprep.subr.bf16.mxu0 0
        %639 = vmatpush1.bf16.msra.mxu0 0
        %640 = vmatprep.subr.bf16.mxu0 0
        %641 = vmatpush1.bf16.msra.mxu0 0
        %642 = vmatprep.subr.bf16.mxu0 0
        %643 = vmatpush1.bf16.msra.mxu0 0
        %644 = vmatprep.subr.bf16.mxu0 0
        %645 = vmatpush1.bf16.msra.mxu0 0
        %646 = vmatprep.subr.bf16.mxu0 0
        %647 = vmatpush1.bf16.msra.mxu0 0
        %648 = vmatprep.subr.bf16.mxu0 0
        %649 = vmatpush1.bf16.msra.mxu0 0
        %650 = vmatprep.subr.bf16.mxu0 0
        %651 = vmatpush1.bf16.msra.mxu0 0
        %652 = vmatprep.subr.bf16.mxu0 0
        %653 = vmatpush1.bf16.msra.mxu0 0
        %654 = vmatprep.subr.bf16.mxu0 0
        %655 = vmatpush1.bf16.msra.mxu0 0
        %656 = vmatprep.subr.bf16.mxu0 0
        %657 = vmatpush1.bf16.msra.mxu0 0
        %658 = vmatprep.subr.bf16.mxu0 0
        %659 = vmatpush1.bf16.msra.mxu0 0
        %660 = vmatprep.mubr.bf16.mxu0 0
        %661 = vmatmul.mubr.bf16.gmra.mrb[0].mxu0 %v617
        %v662 = vpop.f32.mrb[0].mxu0
        %v663 = vadd.f32 0.0, %v662
        %v664 = vpop.f32.mrb[0].mxu0
        %v665 = vpop.f32.mrb[0].mxu0
        %v666 = vadd.f32 0.0, %v665
        %v667 = vpop.f32.mrb[0].mxu0
        %668 = vmatprep.mubr.bf16.mxu0 0
        %669 = vmatmul.mubr.bf16.gmra.mrb[0].mxu0 %v620
        %v670 = vpop.f32.mrb[0].mxu0
        %v671 = vadd.f32 0.0, %v670
        %v672 = vpop.f32.mrb[0].mxu0
        %v673 = vpop.f32.mrb[0].mxu0
        %v674 = vadd.f32 0.0, %v673
        %v675 = vpop.f32.mrb[0].mxu0
        %676 = vmatprep.mubr.bf16.mxu0 0
        %677 = vmatmul.mubr.bf16.gmra.mrb[0].mxu0 %v623
        %v678 = vpop.f32.mrb[0].mxu0
        %v679 = vadd.f32 0.0, %v678
        %v680 = vpop.f32.mrb[0].mxu0
        %v681 = vpop.f32.mrb[0].mxu0
        %v682 = vadd.f32 0.0, %v681
        %v683 = vpop.f32.mrb[0].mxu0
        %684 = vmatprep.mubr.bf16.mxu0 0
        %685 = vmatmul.mubr.bf16.gmra.mrb[0].mxu0 %v626
        %v686 = vpop.f32.mrb[0].mxu0
        %v687 = vadd.f32 0.0, %v686
        %v688 = vpop.f32.mrb[0].mxu0
        %v689 = vpop.f32.mrb[0].mxu0
        %v690 = vadd.f32 0.0, %v689
        %v691 = vpop.f32.mrb[0].mxu0
        %692 = vdwg.mxu0
        %v693 = vadd.f32 %v545, %v663
        %v694 = vadd.f32 %v548, %v666
        %v695 = vadd.f32 %v553, %v671
        %v696 = vadd.f32 %v556, %v674
        %v697 = vadd.f32 %v561, %v679
        %v698 = vadd.f32 %v564, %v682
        %v699 = vadd.f32 %v569, %v687
        %v700 = vadd.f32 %v572, %v690
        %v701 = vld [vmem:[%s578] sm:$0xf]
        %v702 = vld [vmem:[%s578 + $0x4] sm:$0x1]
        %v703 = vld [vmem:[%s578 + $0x8] sm:$0xf]
        %v704 = vld [vmem:[%s578 + $0xc] sm:$0x1]
        %v705 = vld [vmem:[%s578 + $0x10] sm:$0xf]
        %v706 = vld [vmem:[%s578 + $0x14] sm:$0x1]
        %v707 = vld [vmem:[%s578 + $0x18] sm:$0xf]
        %v708 = vld [vmem:[%s578 + $0x1c] sm:$0x1]
        %v709 = vld [vmem:[%s578 + $0x20] sm:$0xf]
        %v710 = vld [vmem:[%s578 + $0x24] sm:$0x1]
        %v711 = vld [vmem:[%s578 + $0x28] sm:$0xf]
        %v712 = vld [vmem:[%s578 + $0x2c] sm:$0x1]
        %v713 = vld [vmem:[%s578 + $0x30] sm:$0xf]
        %v714 = vld [vmem:[%s578 + $0x34] sm:$0x1]
        %v715 = vld [vmem:[%s578 + $0x38] sm:$0xf]
        %v716 = vld [vmem:[%s578 + $0x3c] sm:$0x1]
        %v718 = vshrl.u32 %v701, 16
        %v720 = vrot.slane %v718, 4
        %v721 = vshll.u32 %v701, 16
        %v723 = vrot.slane %v721, 5
        %v724 = vor.u32 %v720, %v723
        %v725 = vrot.slane %v724, 4
        %v727 = vshll.u32 %v702, 16
        %v729 = vrot.slane %v727, 5
        %v730 = vsel %vm260, %v725, %v729
        %v732 = vshrl.u32 %v703, 16
        %v734 = vrot.slane %v732, 4
        %v735 = vshll.u32 %v703, 16
        %v737 = vrot.slane %v735, 5
        %v738 = vor.u32 %v734, %v737
        %v739 = vrot.slane %v738, 4
        %v741 = vshll.u32 %v704, 16
        %v743 = vrot.slane %v741, 5
        %v744 = vsel %vm260, %v739, %v743
        %v746 = vshrl.u32 %v705, 16
        %v748 = vrot.slane %v746, 4
        %v749 = vshll.u32 %v705, 16
        %v751 = vrot.slane %v749, 5
        %v752 = vor.u32 %v748, %v751
        %v753 = vrot.slane %v752, 4
        %v755 = vshll.u32 %v706, 16
        %v757 = vrot.slane %v755, 5
        %v758 = vsel %vm260, %v753, %v757
        %v760 = vshrl.u32 %v707, 16
        %v762 = vrot.slane %v760, 4
        %v763 = vshll.u32 %v707, 16
        %v765 = vrot.slane %v763, 5
        %v766 = vor.u32 %v762, %v765
        %v767 = vrot.slane %v766, 4
        %v769 = vshll.u32 %v708, 16
        %v771 = vrot.slane %v769, 5
        %v772 = vsel %vm260, %v767, %v771
        %v774 = vshrl.u32 %v709, 16
        %v776 = vrot.slane %v774, 4
        %v777 = vshll.u32 %v709, 16
        %v779 = vrot.slane %v777, 5
        %v780 = vor.u32 %v776, %v779
        %v781 = vrot.slane %v780, 4
        %v783 = vshll.u32 %v710, 16
        %v785 = vrot.slane %v783, 5
        %v786 = vsel %vm260, %v781, %v785
        %v788 = vshrl.u32 %v711, 16
        %v790 = vrot.slane %v788, 4
        %v791 = vshll.u32 %v711, 16
        %v793 = vrot.slane %v791, 5
        %v794 = vor.u32 %v790, %v793
        %v795 = vrot.slane %v794, 4
        %v797 = vshll.u32 %v712, 16
        %v799 = vrot.slane %v797, 5
        %v800 = vsel %vm260, %v795, %v799
        %v802 = vshrl.u32 %v713, 16
        %v804 = vrot.slane %v802, 4
        %v805 = vshll.u32 %v713, 16
        %v807 = vrot.slane %v805, 5
        %v808 = vor.u32 %v804, %v807
        %v809 = vrot.slane %v808, 4
        %v811 = vshll.u32 %v714, 16
        %v813 = vrot.slane %v811, 5
        %v814 = vsel %vm260, %v809, %v813
        %v816 = vshrl.u32 %v715, 16
        %v818 = vrot.slane %v816, 4
        %v819 = vshll.u32 %v715, 16
        %v821 = vrot.slane %v819, 5
        %v822 = vor.u32 %v818, %v821
        %v823 = vrot.slane %v822, 4
        %v825 = vshll.u32 %v716, 16
        %v827 = vrot.slane %v825, 5
        %v828 = vsel %vm260, %v823, %v827
        %s829 = scalar_lea.vmem %s1, 24
        %v830 = vld [vmem:[%s829] sm:$0xf]
        %v831 = vld [vmem:[%s829 + $0x4] sm:$0xf]
        %v832 = vunpack.c.l.b16 %v730
        %v833 = vunpack.c.l.b16 %v744
        %v834 = vunpack.c.l.b16 %v758
        %v835 = vunpack.c.l.b16 %v772
        %v836 = vunpack.c.l.b16 %v786
        %v837 = vunpack.c.l.b16 %v800
        %v838 = vunpack.c.l.b16 %v814
        %v839 = vunpack.c.l.b16 %v828
        %v840 = vpack.c.b16 %v833, %v832
        %v841 = vpack.c.b16 %v835, %v834
        %v842 = vpack.c.b16 %v837, %v836
        %v843 = vpack.c.b16 %v839, %v838
        %v846 = vunpack.c.l.b16 %v830
        %v847 = vunpack.c.l.b16 %v831
        %v848 = vpack.c.b16 %v847, %v846
        %v851 = vsel %vm394, %v840, 0
        %v854 = vsel %vm394, %v841, 0
        %v857 = vsel %vm394, %v842, 0
        %v860 = vsel %vm394, %v843, 0
        %862 = vmatprep.subr.bf16.mxu0 0
        %863 = vmatpush1.bf16.msra.mxu0 %v848
        %864 = vmatprep.subr.bf16.mxu0 0
        %865 = vmatpush1.bf16.msra.mxu0 0
        %866 = vmatprep.subr.bf16.mxu0 0
        %867 = vmatpush1.bf16.msra.mxu0 0
        %868 = vmatprep.subr.bf16.mxu0 0
        %869 = vmatpush1.bf16.msra.mxu0 0
        %870 = vmatprep.subr.bf16.mxu0 0
        %871 = vmatpush1.bf16.msra.mxu0 0
        %872 = vmatprep.subr.bf16.mxu0 0
        %873 = vmatpush1.bf16.msra.mxu0 0
        %874 = vmatprep.subr.bf16.mxu0 0
        %875 = vmatpush1.bf16.msra.mxu0 0
        %876 = vmatprep.subr.bf16.mxu0 0
        %877 = vmatpush1.bf16.msra.mxu0 0
        %878 = vmatprep.subr.bf16.mxu0 0
        %879 = vmatpush1.bf16.msra.mxu0 0
        %880 = vmatprep.subr.bf16.mxu0 0
        %881 = vmatpush1.bf16.msra.mxu0 0
        %882 = vmatprep.subr.bf16.mxu0 0
        %883 = vmatpush1.bf16.msra.mxu0 0
        %884 = vmatprep.subr.bf16.mxu0 0
        %885 = vmatpush1.bf16.msra.mxu0 0
        %886 = vmatprep.subr.bf16.mxu0 0
        %887 = vmatpush1.bf16.msra.mxu0 0
        %888 = vmatprep.subr.bf16.mxu0 0
        %889 = vmatpush1.bf16.msra.mxu0 0
        %890 = vmatprep.subr.bf16.mxu0 0
        %891 = vmatpush1.bf16.msra.mxu0 0
        %892 = vmatprep.subr.bf16.mxu0 0
        %893 = vmatpush1.bf16.msra.mxu0 0
        %894 = vmatprep.mubr.bf16.mxu0 0
        %895 = vmatmul.mubr.bf16.gmra.mrb[0].mxu0 %v851
        %v896 = vpop.f32.mrb[0].mxu0
        %v897 = vadd.f32 0.0, %v896
        %v898 = vpop.f32.mrb[0].mxu0
        %v899 = vpop.f32.mrb[0].mxu0
        %v900 = vadd.f32 0.0, %v899
        %v901 = vpop.f32.mrb[0].mxu0
        %902 = vmatprep.mubr.bf16.mxu0 0
        %903 = vmatmul.mubr.bf16.gmra.mrb[0].mxu0 %v854
        %v904 = vpop.f32.mrb[0].mxu0
        %v905 = vadd.f32 0.0, %v904
        %v906 = vpop.f32.mrb[0].mxu0
        %v907 = vpop.f32.mrb[0].mxu0
        %v908 = vadd.f32 0.0, %v907
        %v909 = vpop.f32.mrb[0].mxu0
        %910 = vmatprep.mubr.bf16.mxu0 0
        %911 = vmatmul.mubr.bf16.gmra.mrb[0].mxu0 %v857
        %v912 = vpop.f32.mrb[0].mxu0
        %v913 = vadd.f32 0.0, %v912
        %v914 = vpop.f32.mrb[0].mxu0
        %v915 = vpop.f32.mrb[0].mxu0
        %v916 = vadd.f32 0.0, %v915
        %v917 = vpop.f32.mrb[0].mxu0
        %918 = vmatprep.mubr.bf16.mxu0 0
        %919 = vmatmul.mubr.bf16.gmra.mrb[0].mxu0 %v860
        %v920 = vpop.f32.mrb[0].mxu0
        %v921 = vadd.f32 0.0, %v920
        %v922 = vpop.f32.mrb[0].mxu0
        %v923 = vpop.f32.mrb[0].mxu0
        %v924 = vadd.f32 0.0, %v923
        %v925 = vpop.f32.mrb[0].mxu0
        %926 = vdwg.mxu0
        %v927 = vadd.f32 %v693, %v897
        %v928 = vadd.f32 %v694, %v900
        %v929 = vadd.f32 %v695, %v905
        %v930 = vadd.f32 %v696, %v908
        %v931 = vadd.f32 %v697, %v913
        %v932 = vadd.f32 %v698, %v916
        %v933 = vadd.f32 %v699, %v921
        %v934 = vadd.f32 %v700, %v924
        %v935 = vpack.c.bf16 %v928, %v927
        %v936 = vpack.c.bf16 %v930, %v929
        %v937 = vpack.c.bf16 %v932, %v931
        %v938 = vpack.c.bf16 %v934, %v933
        %v943 = vunpack.c.l.b16 %v935
        %v944 = vunpack.c.h.b16 %v935
        %v945 = vunpack.c.l.b16 %v936
        %v946 = vunpack.c.h.b16 %v936
        %v947 = vunpack.c.l.b16 %v937
        %v948 = vunpack.c.h.b16 %v937
        %v949 = vunpack.c.l.b16 %v938
        %v950 = vunpack.c.h.b16 %v938
        %v951 = vpack.c.b16 %v943, %v943
        %v952 = vpack.c.b16 %v944, %v944
        %v953 = vpack.c.b16 %v945, %v945
        %v954 = vpack.c.b16 %v946, %v946
        %v955 = vpack.c.b16 %v947, %v947
        %v956 = vpack.c.b16 %v948, %v948
        %v957 = vpack.c.b16 %v949, %v949
        %v958 = vpack.c.b16 %v950, %v950
        %967 = vst [vmem:[%s212] sm:$0xf] %v951
        %968 = vst [vmem:[%s212 + $0x4] sm:$0xf] %v952
        %969 = vst [vmem:[%s212 + $0x8] sm:$0xf] %v953
        %970 = vst [vmem:[%s212 + $0xc] sm:$0xf] %v954
        %971 = vst [vmem:[%s212 + $0x10] sm:$0xf] %v955
        %972 = vst [vmem:[%s212 + $0x14] sm:$0xf] %v956
        %973 = vst [vmem:[%s212 + $0x18] sm:$0xf] %v957
        %974 = vst [vmem:[%s212 + $0x1c] sm:$0xf] %v958
        %v975 = vadd.f32 %v927, %v928
        %v976 = vadd.f32 %v975, %v929
        %v977 = vadd.f32 %v976, %v930
        %v978 = vadd.f32 %v977, %v931
        %v979 = vadd.f32 %v978, %v932
        %v980 = vadd.f32 %v979, %v933
        %v981 = vadd.f32 %v980, %v934
        %v982 = vrot.slane %v981, 4
        %v983 = vadd.f32 %v981, %v982
        %v984 = vrot.slane %v983, 2
        %v985 = vadd.f32 %v983, %v984
        %v986 = vrot.slane %v985, 1
        %v987 = vadd.f32 %v985, %v986
        %v988 = vmul.f32 %v927, %v927
        %v989 = vmul.f32 %v928, %v928
        %v990 = vmul.f32 %v929, %v929
        %v991 = vmul.f32 %v930, %v930
        %v992 = vmul.f32 %v931, %v931
        %v993 = vmul.f32 %v932, %v932
        %v994 = vmul.f32 %v933, %v933
        %v995 = vmul.f32 %v934, %v934
        %v996 = vadd.f32 %v988, %v989
        %v997 = vadd.f32 %v996, %v990
        %v998 = vadd.f32 %v997, %v991
        %v999 = vadd.f32 %v998, %v992
        %v1000 = vadd.f32 %v999, %v993
        %v1001 = vadd.f32 %v1000, %v994
        %v1002 = vadd.f32 %v1001, %v995
        %v1003 = vrot.slane %v1002, 4
        %v1004 = vadd.f32 %v1002, %v1003
        %v1005 = vrot.slane %v1004, 2
        %v1006 = vadd.f32 %v1004, %v1005
        %v1007 = vrot.slane %v1006, 1
        %v1008 = vadd.f32 %v1006, %v1007
        %1009 = vst [vmem:[%s219] sm:$0xff] %v987
        %1010 = vst [vmem:[%s226] sm:$0xff] %v1008
        %s1011 = sand.u32 %s91, 1
        %s1012 = scalar_lea.sflag [#allocation3], %s1011
        %s1013 = sand.u32 %s91, 1
        %s1014 = smul.addr %s1013, 32
        %s1015 = scalar_lea.vmem [#allocation2], %s1014
        %s1016 = sand.u32 %s22, 1
        %s1017 = scalar_lea.sflag [#allocation5], %s1016
        %s1018 = sand.u32 %s119, 1
        %s1019 = smul.addr %s1018, 8
        %s1020 = scalar_lea.vmem [#allocation4], %s1019
        %s1021 = sand.u32 %s22, 1
        %s1022 = scalar_lea.sflag [#allocation5], %s1021
        %s1023 = sand.u32 %s147, 1
        %s1024 = smul.addr %s1023, 8
        %s1025 = scalar_lea.vmem [#allocation6], %s1024
        // Predicated region
        $region29: #{tpu_custom_call.1} parent=27 // pred_check
          %p1026 = pneg %p101
        $region30: #{tpu_custom_call.1} parent=27 // pred_check_branch
          %1028 = sbr.rel (%p1026) target = $region32
        $region31: #{tpu_custom_call.1} parent=27 // pred_region
          %s1029 = smul.u32 8, %s27
          %s1031 = ssub.s32 512, 512
          %1032 = vsyncadd %s1012, %s1031
          %s1033 = smul.addr %s26, 8
          %s1034 = sadd.s32 %s1029, %s1033
          %s1035 = smul.addr %s1034, 64
          %s1036 = scalar_lea.hbm %s2, %s1035
          %s1037 = sshll.u32 %s1015, 4
          %s1038 = int_to_ptr.vmem [resolvable:$true] %s1037
          %1043 = dma.vmem_to_hbm [thread:$0]  %s1038, 512, %s1036, %s1012, 64, 64, 4
        $region32: #{tpu_custom_call.1} parent=27 // pred_fallthru
          _
        // Predicated region
        $region33: #{tpu_custom_call.1} parent=27 // pred_check
          %p1044 = pneg %p129
        $region34: #{tpu_custom_call.1} parent=27 // pred_check_branch
          %1046 = sbr.rel (%p1044) target = $region36
        $region35: #{tpu_custom_call.1} parent=27 // pred_region
          %s1047 = sadd.s32 %s26, %s27
          %s1049 = ssub.s32 128, 128
          %1050 = vsyncadd %s1017, %s1049
          %s1051 = smul.addr %s1047, 128
          %s1052 = scalar_lea.hbm %s3, %s1051
          %s1054 = sshll.u32 %s1020, 4
          %s1055 = int_to_ptr.vmem [resolvable:$true] %s1054
          %1057 = dma.vmem_to_hbm [thread:$0]  %s1055, 128, %s1052, %s1017
        $region36: #{tpu_custom_call.1} parent=27 // pred_fallthru
          _
        // Predicated region
        $region37: #{tpu_custom_call.1} parent=27 // pred_check
          %p1058 = pneg %p157
        $region38: #{tpu_custom_call.1} parent=27 // pred_check_branch
          %1060 = sbr.rel (%p1058) target = $region40
        $region39: #{tpu_custom_call.1} parent=27 // pred_region
          %s1061 = sadd.s32 %s26, %s27
          %s1063 = ssub.s32 128, 128
          %1064 = vsyncadd %s1022, %s1063
          %s1065 = smul.addr %s1061, 128
          %s1066 = scalar_lea.hbm %s4, %s1065
          %s1068 = sshll.u32 %s1025, 4
          %s1069 = int_to_ptr.vmem [resolvable:$true] %s1068
          %1071 = dma.vmem_to_hbm [thread:$0]  %s1069, 128, %s1066, %s1022
        $region40: #{tpu_custom_call.1} parent=27 // pred_fallthru
          _
      $region28: #{tpu_custom_call.1} parent=5 // pred_fallthru
        _
      %p1072 = scmp.le.s32.totalorder 2, %s17
      // Predicated region
      $region41: #{tpu_custom_call.1} parent=5 // pred_check
        %p1073 = pneg %p1072
      $region42: #{tpu_custom_call.1} parent=5 // pred_check_branch
        %1075 = sbr.rel (%p1073) target = $region44
      $region43: #{tpu_custom_call.1} parent=5 // pred_region
        %s1076 = ssub.s32 %s17, 2
        // Predicated region
        $region45: #{tpu_custom_call.1} parent=43 // pred_check
          %p1077 = pneg %p107
        $region46: #{tpu_custom_call.1} parent=43 // pred_check_branch
          %1079 = sbr.rel (%p1077) target = $region48
        $region47: #{tpu_custom_call.1} parent=43 // pred_region
          %s1080 = sand.u32 %s92, 1
          %s1081 = scalar_lea.sflag [#allocation3], %s1080
          %s1082 = sand.u32 %s92, 1
          %s1083 = smul.addr %s1082, 32
          %s1084 = scalar_lea.vmem [#allocation2], %s1083
          %1085 = dma.done %s1081, 512
        $region48: #{tpu_custom_call.1} parent=43 // pred_fallthru
          _
        // Predicated region
        $region49: #{tpu_custom_call.1} parent=43 // pred_check
          %p1086 = pneg %p135
        $region50: #{tpu_custom_call.1} parent=43 // pred_check_branch
          %1088 = sbr.rel (%p1086) target = $region52
        $region51: #{tpu_custom_call.1} parent=43 // pred_region
          %s1089 = sand.u32 %s23, 1
          %s1090 = scalar_lea.sflag [#allocation5], %s1089
          %s1091 = sand.u32 %s120, 1
          %s1092 = smul.addr %s1091, 8
          %s1093 = scalar_lea.vmem [#allocation4], %s1092
          %1094 = dma.done %s1090, 128
        $region52: #{tpu_custom_call.1} parent=43 // pred_fallthru
          _
        // Predicated region
        $region53: #{tpu_custom_call.1} parent=43 // pred_check
          %p1095 = pneg %p163
        $region54: #{tpu_custom_call.1} parent=43 // pred_check_branch
          %1097 = sbr.rel (%p1095) target = $region56
        $region55: #{tpu_custom_call.1} parent=43 // pred_region
          %s1098 = sand.u32 %s23, 1
          %s1099 = scalar_lea.sflag [#allocation5], %s1098
          %s1100 = sand.u32 %s148, 1
          %s1101 = smul.addr %s1100, 8
          %s1102 = scalar_lea.vmem [#allocation6], %s1101
          %1103 = dma.done %s1099, 128
        $region56: #{tpu_custom_call.1} parent=43 // pred_fallthru
          _
      $region44: #{tpu_custom_call.1} parent=5 // pred_fallthru
        _
    $region6: #{tpu_custom_call.1} parent=1 // loop_footer
      %s21 = sadd.s32 1, %s17
    $region7: #{tpu_custom_call.1} parent=1 // loop_footer_branch
      %16 = sbr.rel target = $region3
    $region8: #{tpu_custom_call.1} parent=1 // loop_exit
      _
    %1104 = vsyncpa [#allocation3], 1
    %s1105 = scalar_lea.sflag [#allocation3], 1
    %1106 = vsyncpa %s1105, 1
    %1107 = vsyncpa [#allocation5], 1
    %s1108 = scalar_lea.sflag [#allocation5], 1
    %1109 = vsyncpa %s1108, 1

</llo_original>
